<compile_context>
chip_gen: v7x
topology: tpu7x:2x2x1
jax: 0.10.0
libtpu: 0.0.40
codegen_flags: <defaults>
</compile_context>

<pallas_src>
import functools

import jax
import jax.numpy as jnp
import numpy as np
from jax import lax
from jax.experimental import pallas as pl
from jax.experimental.pallas import tpu as pltpu


_MIB = 1024 * 1024
_POWER_ITERS = 4


def _round_up(x, m):
    return ((x + m - 1) // m) * m


def _vmem_limit_bytes():
    """Physical-VMEM-aware scoped limit (v5e/v6e: 128 MiB phys, v7x: 64 MiB)."""
    phys = 64 * _MIB  # conservative default (v7x per-TensorCore)
    try:
        info = pltpu.get_tpu_info()
        for attr in ("vmem_capacity_bytes", "vmem_bytes", "vmem_size_bytes"):
            val = getattr(info, attr, None)
            if val:
                phys = int(val)
                break
    except Exception:
        pass
    # ~75% of physical: ~48 MiB on v7x, ~96 MiB on v5e/v6e.
    return min(phys * 3 // 4, 100 * _MIB)


def _vmem_footprint(rows, cols, dtype):
    """Bytes of a (rows, cols) VMEM tile including (sublane, lane) padding."""
    itemsize = jnp.dtype(dtype).itemsize
    sub = max(8, 32 // itemsize)  # f32 -> 8 sublanes, bf16 -> 16
    return _round_up(rows, sub) * _round_up(cols, 128) * itemsize


# ---------------------------------------------------------------------------
# Fused kernel: one grid step per batch, x_b resident in VMEM.
#   out_b = (x_b x_b^T (gamma W_sn)) @ x_b + x_b
# ---------------------------------------------------------------------------
def _fused_kernel(w_ref, x_ref, o_ref, *, n_valid):
    # w_ref: (C, C) f32 (gamma already folded in); x_ref/o_ref: (C, lane_n).
    x = x_ref[...]
    if n_valid != x.shape[-1]:
        # Block is wider than N: zero the undefined tail lanes before xxT.
        col = lax.broadcasted_iota(jnp.int32, x.shape, 1)
        x = jnp.where(col < n_valid, x, jnp.zeros_like(x))
    # xxT = x @ x^T without materializing x.T (contract the lane axis of both).
    xxt = lax.dot_general(x, x, (((1,), (1,)), ((), ())),
                          preferred_element_type=jnp.float32)
    m = jnp.dot(xxt, w_ref[...], preferred_element_type=jnp.float32)  # f32 (C, C)
    xf = x.astype(jnp.float32)
    o = jnp.dot(m, xf, preferred_element_type=jnp.float32)
    o_ref[...] = (o + xf).astype(o_ref.dtype)  # OOB columns dropped on writeback


# ---------------------------------------------------------------------------
# Streamed pass 1: accumulate xxT over N tiles (output block resident over n).
# ---------------------------------------------------------------------------
def _xxt_kernel(x_ref, xxt_ref, *, n_valid, tn):
    n = pl.program_id(1)

    @pl.when(n == 0)
    def _():
        xxt_ref[...] = jnp.zeros_like(xxt_ref)

    x = x_ref[...]  # (C, tn)
    if n_valid % tn != 0:
        # Edge tile extends past N: its out-of-bounds lanes are undefined.
        col = n * tn + lax.broadcasted_iota(jnp.int32, x.shape, 1)
        x = jnp.where(col < n_valid, x, jnp.zeros_like(x))
    xxt_ref[...] += lax.dot_general(x, x, (((1,), (1,)), ((), ())),
                                    preferred_element_type=jnp.float32)


# ---------------------------------------------------------------------------
# Streamed pass 2: out_tile = M_b @ x_tile + x_tile (M_b f32, math in f32).
# ---------------------------------------------------------------------------
def _apply_kernel(m_ref, x_ref, o_ref):
    xf = x_ref[...].astype(jnp.float32)                      # (C, tn)
    o = jnp.dot(m_ref[...], xf, preferred_element_type=jnp.float32)
    # Garbage in edge-tile OOB columns stays in OOB columns (column-wise op)
    # and the out-of-bounds portion of the store is dropped by Pallas.
    o_ref[...] = (o + xf).astype(o_ref.dtype)


# ---------------------------------------------------------------------------
# Parameter glue (plain JAX): spectral norm via short power iteration + sym.
# ---------------------------------------------------------------------------
def _spectral_normalize(w, sym, n_iter=_POWER_ITERS, eps=1e-12):
    c = w.shape[0]
    u0 = jnp.ones((c,), w.dtype) / jnp.sqrt(jnp.asarray(c, w.dtype))

    def body(_, u):
        v = w.T @ u
        v = v / (jnp.linalg.norm(v) + eps)
        u = w @ v
        u = u / (jnp.linalg.norm(u) + eps)
        return u

    u = lax.fori_loop(0, n_iter, body, u0)
    v = w.T @ u
    v = v / (jnp.linalg.norm(v) + eps)
    sigma = u @ (w @ v)
    w_sn = w / sigma
    if sym:
        w_sn = (w_sn + w_sn.T) / 2.0
    return w_sn


@functools.partial(jax.jit, static_argnames=("sym", "force_streamed", "max_tn"))
def self_attention_forward(x_nchw, conv_weight, gamma, sym=False,
                           force_streamed=False, max_tn=None):
    """x_nchw: (B, C, H, W); conv_weight: (C, C, 1, 1); gamma: (1,)."""
    B, C, H, W = x_nchw.shape
    N = H * W
    in_dtype = x_nchw.dtype

    w = conv_weight.reshape(C, C).astype(jnp.float32)
    w_sn = _spectral_normalize(w, sym)
    # Fold gamma: M_b = (x_b x_b^T) @ (gamma * W_sn).
    w_g = gamma.reshape(()).astype(jnp.float32) * w_sn

    x_flat = x_nchw.reshape(B, C, N)

    vmem_limit = _vmem_limit_bytes()
    budget = int(vmem_limit * 0.85)
    lane_n = _round_up(N, 128)

    # -- Fused path: per-batch slab resident in VMEM ------------------------
    slab = _vmem_footprint(C, lane_n, in_dtype)
    slab_f32 = _vmem_footprint(C, lane_n, jnp.float32)
    # 2x double-buffered in + 2x out slabs + f32 intermediates + slack.
    fused_bytes = 4 * slab + 3 * slab_f32 + 2 * _MIB

    if not force_streamed and fused_bytes <= budget:
        out_flat = pl.pallas_call(
            functools.partial(_fused_kernel, n_valid=N),
            out_shape=jax.ShapeDtypeStruct((B, C, N), in_dtype),
            grid_spec=pltpu.PrefetchScalarGridSpec(
                num_scalar_prefetch=0,
                grid=(B,),
                in_specs=[
                    pl.BlockSpec((C, C), lambda b: (0, 0)),                       # gamma*W_sn
                    pl.BlockSpec((pl.Squeezed(), C, lane_n), lambda b: (b, 0, 0)),  # x_b slab
                ],
                out_specs=pl.BlockSpec((pl.Squeezed(), C, lane_n),
                                       lambda b: (b, 0, 0)),
            ),
            compiler_params=pltpu.CompilerParams(
                dimension_semantics=("parallel",),
                vmem_limit_bytes=vmem_limit,
            ),
        )(w_g, x_flat)
        return out_flat.reshape(B, C, H, W)

    # -- Streamed fallback (two passes over x) ------------------------------
    tn = 128
    for cand in (2048, 1024, 512, 256, 128):
        if max_tn is not None and cand > max_tn:
            continue
        t = min(cand, lane_n)
        tile = _vmem_footprint(C, t, in_dtype)
        tile_f32 = _vmem_footprint(C, t, jnp.float32)
        # 3 in-buffers (Buffered(3)) + 2 out-buffers + f32 temps + slack.
        if 5 * tile + 2 * tile_f32 + 2 * _MIB <= budget:
            tn = t
            break
    n_tiles = pl.cdiv(N, tn)

    def x_stream_spec():
        kwargs = {}
        if n_tiles >= 3:
            kwargs["pipeline_mode"] = pl.Buffered(3)
        return pl.BlockSpec((pl.Squeezed(), C, tn), lambda b, n: (b, 0, n), **kwargs)

    # Pass 1: xxT only (W_sn / gamma decoupled so XLA can overlap them).
    xxt = pl.pallas_call(
        functools.partial(_xxt_kernel, n_valid=N, tn=tn),
        out_shape=jax.ShapeDtypeStruct((B, C, C), jnp.float32),
        grid_spec=pltpu.PrefetchScalarGridSpec(
            num_scalar_prefetch=0,
            grid=(B, n_tiles),
            in_specs=[x_stream_spec()],
            out_specs=pl.BlockSpec((pl.Squeezed(), C, C), lambda b, n: (b, 0, 0)),
        ),
        compiler_params=pltpu.CompilerParams(
            dimension_semantics=("parallel", "arbitrary"),
            vmem_limit_bytes=vmem_limit,
        ),
    )(x_flat)

    # Tiny (B, C, C) x (C, C) contraction in XLA, kept in f32.
    m = jnp.einsum("bij,jk->bik", xxt, w_g)

    # Pass 2: out = M_b @ x + x, streamed over N tiles.
    out_flat = pl.pallas_call(
        _apply_kernel,
        out_shape=jax.ShapeDtypeStruct((B, C, N), in_dtype),
        grid_spec=pltpu.PrefetchScalarGridSpec(
            num_scalar_prefetch=0,
            grid=(B, n_tiles),
            in_specs=[
                pl.BlockSpec((pl.Squeezed(), C, C), lambda b, n: (b, 0, 0)),
                x_stream_spec(),
            ],
            out_specs=pl.BlockSpec((pl.Squeezed(), C, tn), lambda b, n: (b, 0, n)),
        ),
        compiler_params=pltpu.CompilerParams(
            dimension_semantics=("parallel", "parallel"),
            vmem_limit_bytes=vmem_limit,
        ),
    )(m, x_flat)

    return out_flat.reshape(B, C, H, W)


# ---------------------------------------------------------------------------
# Reference (original 3-matmul formulation) for validation.
# ---------------------------------------------------------------------------
def _reference(x_nchw, conv_weight, gamma, sym=False):
    B, C, H, W = x_nchw.shape
    N = H * W
    w = conv_weight.reshape(C, C).astype(jnp.float32)
    w = _spectral_normalize(w, sym)
    x = x_nchw.reshape(B, C, N).astype(jnp.float32)
    convx = jnp.einsum("oc,bcn->bon", w, x)
    xxT = jnp.einsum("bcn,bdn->bcd", x, x)
    o = jnp.einsum("bcd,bdn->bcn", xxT, convx)
    o = gamma.reshape(()) * o + x
    return o.reshape(B, C, H, W)


if __name__ == "__main__":
    key = jax.random.PRNGKey(0)
    k_x, k_w, k_x2, k_x3 = jax.random.split(key, 4)

    B, C, H, W = 2, 4, 16, 16
    x = jax.random.normal(k_x, (B, C, H, W), dtype=jnp.float32)
    # Conv2d(C, C, 1, bias=False) weight shape: (C, C, 1, 1)
    conv_weight = jax.random.normal(k_w, (C, C, 1, 1), dtype=jnp.float32) * 0.1
    gamma0 = jnp.array([0.0], dtype=jnp.float32)   # module init value
    gamma1 = jnp.array([0.3], dtype=jnp.float32)

    # Fused path, gamma = 0 (pure residual).
    out0 = self_attention_forward(x, conv_weight, gamma0)
    jax.block_until_ready(out0)
    np.testing.assert_allclose(np.asarray(out0),
                               np.asarray(_reference(x, conv_weight, gamma0)),
                               rtol=1e-4, atol=5e-4)

    # Fused path, nonzero gamma.
    out1 = self_attention_forward(x, conv_weight, gamma1)
    jax.block_until_ready(out1)
    np.testing.assert_allclose(np.asarray(out1),
                               np.asarray(_reference(x, conv_weight, gamma1)),
                               rtol=1e-4, atol=5e-4)

    # sym=True path.
    out_sym = self_attention_forward(x, conv_weight, gamma1, sym=True)
    jax.block_until_ready(out_sym)
    np.testing.assert_allclose(np.asarray(out_sym),
                               np.asarray(_reference(x, conv_weight, gamma1, sym=True)),
                               rtol=1e-4, atol=5e-4)

    # Streamed fallback: multi-tile reduction, masked ragged edge tile (N=400,
    # tn=128 forced), Buffered(3) input pipeline.
    x3 = jax.random.normal(k_x3, (B, C, 20, 20), dtype=jnp.float32)
    out_st = self_attention_forward(x3, conv_weight, gamma1,
                                    force_streamed=True, max_tn=128)
    jax.block_until_ready(out_st)
    np.testing.assert_allclose(np.asarray(out_st),
                               np.asarray(_reference(x3, conv_weight, gamma1)),
                               rtol=1e-4, atol=5e-4)

    # Ragged spatial size (N=130) on the fused path (in-kernel edge masking).
    x2 = jax.random.normal(k_x2, (B, C, 10, 13), dtype=jnp.float32)
    out2 = self_attention_forward(x2, conv_weight, gamma1)
    jax.block_until_ready(out2)
    np.testing.assert_allclose(np.asarray(out2),
                               np.asarray(_reference(x2, conv_weight, gamma1)),
                               rtol=1e-4, atol=5e-4)

    # Same ragged shape on the streamed path (single masked edge tile).
    out2s = self_attention_forward(x2, conv_weight, gamma1, force_streamed=True)
    jax.block_until_ready(out2s)
    np.testing.assert_allclose(np.asarray(out2s),
                               np.asarray(_reference(x2, conv_weight, gamma1)),
                               rtol=1e-4, atol=5e-4)

    # bf16 activations pass straight through (bf16 in/out, f32 accumulation).
    x_bf16 = x.astype(jnp.bfloat16)
    out_bf = self_attention_forward(x_bf16, conv_weight, gamma1)
    jax.block_until_ready(out_bf)
    np.testing.assert_allclose(np.asarray(out_bf, dtype=np.float32),
                               np.asarray(_reference(x_bf16, conv_weight, gamma1)),
                               rtol=1e-1, atol=2.0)

    print("KERNEL_OK")
</pallas_src>

<mosaic_0001>
module attributes {stable_mosaic.version = 11 : i64} {
  func.func @_fused_kernel(%arg0: i32, %arg1: memref<4x4xf32, #tpu.memory_space<vmem>>, %arg2: memref<1x4x256xf32, #tpu.memory_space<vmem>>, %arg3: memref<1x4x256xf32, #tpu.memory_space<vmem>>) attributes {dimension_semantics = [#tpu.dimension_semantics<parallel>], iteration_bounds = array<i64: 2>, scalar_prefetch = 0 : i64, scratch_operands = 0 : i64, tpu.core_type = #tpu.core_type<tc>, window_params = [{pipeline_mode = #tpu.pipeline_mode<synchronous>, transform_indices = @transform_0, window_bounds = array<i64: 4, 4>}, {transform_indices = @transform_1, window_bounds = array<i64: 1, 4, 256>}, {transform_indices = @transform_2, window_bounds = array<i64: 1, 4, 256>}]} {
    %c0 = arith.constant 0 : index
    %c0_0 = arith.constant 0 : index
    %c0_1 = arith.constant 0 : index
    %0 = vector.load %arg2[%c0, %c0_0, %c0_1] : memref<1x4x256xf32, #tpu.memory_space<vmem>>, vector<1x4x256xf32>
    %1 = vector.shape_cast %0 : vector<1x4x256xf32> to vector<4x256xf32>
    %cst = arith.constant dense<0.000000e+00> : vector<4x4xf32>
    %2 = tpu.matmul %1, %1, %cst {dimension_numbers = #tpu.dot_dimension_numbers<[1], [1], [0], [0], [0, 0, 1, 0], [], []>} : vector<4x256xf32>, vector<4x256xf32>, vector<4x4xf32> -> vector<4x4xf32>
    %c0_2 = arith.constant 0 : index
    %c0_3 = arith.constant 0 : index
    %3 = vector.load %arg1[%c0_2, %c0_3] : memref<4x4xf32, #tpu.memory_space<vmem>>, vector<4x4xf32>
    %cst_4 = arith.constant dense<0.000000e+00> : vector<4x4xf32>
    %4 = tpu.matmul %2, %3, %cst_4 {dimension_numbers = #tpu.dot_dimension_numbers<[1], [0], [0], [1], [0, 0, 1, 1], [], []>} : vector<4x4xf32>, vector<4x4xf32>, vector<4x4xf32> -> vector<4x4xf32>
    %cst_5 = arith.constant dense<0.000000e+00> : vector<4x256xf32>
    %5 = tpu.matmul %4, %1, %cst_5 {dimension_numbers = #tpu.dot_dimension_numbers<[1], [0], [0], [1], [0, 0, 1, 1], [], []>} : vector<4x4xf32>, vector<4x256xf32>, vector<4x256xf32> -> vector<4x256xf32>
    %6 = arith.addf %5, %1 : vector<4x256xf32>
    %c0_6 = arith.constant 0 : index
    %c0_7 = arith.constant 0 : index
    %c0_8 = arith.constant 0 : index
    %7 = vector.load %arg3[%c0_6, %c0_7, %c0_8] : memref<1x4x256xf32, #tpu.memory_space<vmem>>, vector<1x4x256xf32>
    %8 = vector.shape_cast %7 : vector<1x4x256xf32> to vector<4x256xf32>
    %9 = vector.shape_cast %6 : vector<4x256xf32> to vector<1x4x256xf32>
    tpu.vector_store %arg3[%c0_6, %c0_7, %c0_8], %9 {strides = array<i32>} : memref<1x4x256xf32, #tpu.memory_space<vmem>>, vector<1x4x256xf32>,
    return
  }
  func.func @transform_0(%arg0: i32) -> (i32, i32) {
    %c0_i32 = arith.constant 0 : i32
    %c0_i32_0 = arith.constant 0 : i32
    %c0_i32_1 = arith.constant 0 : i32
    return %c0_i32, %c0_i32_0 : i32, i32
  }
  func.func @transform_1(%arg0: i32) -> (i32, i32, i32) {
    %c0_i32 = arith.constant 0 : i32
    %c0_i32_0 = arith.constant 0 : i32
    %c0_i32_1 = arith.constant 0 : i32
    return %arg0, %c0_i32, %c0_i32_0 : i32, i32, i32
  }
  func.func @transform_2(%arg0: i32) -> (i32, i32, i32) {
    %c0_i32 = arith.constant 0 : i32
    %c0_i32_0 = arith.constant 0 : i32
    %c0_i32_1 = arith.constant 0 : i32
    return %arg0, %c0_i32, %c0_i32_0 : i32, i32, i32
  }
}

</mosaic_0001>

<llo_original>
// kernel: custom-call
$region0: #{custom-call}
  %s0 = inlined_call_operand.vmem [shape: f32[4], index: 0, kind: output, shape index: {}]

// kernel: self_attention_forward.1
$region0: #{self_attention_forward.1}
  #allocation0 [shape = 'u32[]', space=smem, size = 0x4, offset = 0x4, fixed_abs, tag = 'smem constant byte address 0x4 - core index']
  #allocation1 [shape = 'u32[144,128]{1,0:T(1,128)}', space=vmem, size = 0x12000, scoped, tag = 'internal scratch']
  %s0 = inlined_call_operand.vmem [shape: f32[4,4], index: 0, kind: input, shape index: {}]
  %s1 = inlined_call_operand.vmem [shape: f32[2,4,256], index: 1, kind: input, shape index: {}]
  %s2 = inlined_call_operand.vmem [shape: f32[2,4,256], index: 2, kind: output, shape index: {}]
  %s3 = sld [smem:[#allocation0]]
  $region41: #{self_attention_forward.1} parent=0
    _
  %s5 = ssub.s32 1, %s3
  %s6 = scalar_select 0, %s5, %s3
  loop: start=0, step=1, limit=4
  $region2: #{self_attention_forward.1} parent=0 // loop_pre_header
    _
  $region3: #{self_attention_forward.1} parent=0 // loop_header
    %s8 = sphi 0, %s12
    %p9 = scmp.ge.s32.totalorder %s8, 4
    %s16 = sphi 0, %s16
    %s18 = sphi 0, %s16
    %s19 = sphi 0, %s18
    %s33 = sphi 0, %s19
    %s39 = sphi 0, %s41
    %s42 = sphi 0, %s39
    %s43 = sphi 0, %s42
    %s59 = sphi 0, %s43
    %s65 = sphi 0, %s67
    %s68 = sphi 0, %s65
    %s69 = sphi 0, %s68
    %s85 = sphi 0, %s69
  $region4: #{self_attention_forward.1} parent=0 // loop_header_branch
    %11 = sbr.rel (%p9) target = $region8
  $region5: #{self_attention_forward.1} parent=0 // loop_body
    %s13 = ssub.s32 %s8, 1
    %s14 = ssub.s32 %s8, 2
    %s15 = sadd.s32 %s8, 1
    %s17 = sadd.s32 %s16, 1
    %p20 = scmp.eq.s32.totalorder %s8, 1
    %p21 = scmp.ne.s32.totalorder %s16, %s18
    %p22 = scmp.eq.s32.totalorder %s8, 0
    %p23 = por %p21, %p22
    %p24 = scmp.ne.s32.totalorder %s16, %s18
    %p25 = scmp.eq.s32.totalorder %s13, 1
    %p26 = por %p24, %p25
    %p27 = scmp.ne.s32.totalorder %s18, %s19
    %p28 = scmp.eq.s32.totalorder %s13, 0
    %p29 = por %p27, %p28
    %p30 = scmp.ne.s32.totalorder %s18, %s19
    %p31 = scmp.eq.s32.totalorder %s14, 1
    %p32 = por %p30, %p31
    %p34 = scmp.ne.s32.totalorder %s19, %s33
    %p35 = scmp.eq.s32.totalorder %s14, 0
    %p36 = por %p34, %p35
    %s37 = ssub.s32 %s8, %s15
    %p38 = scmp.eq.s32.totalorder %s37, 0
    %s40 = sadd.s32 %s39, 1
    %s41 = scalar_select %p38, %s39, %s40
    %p44 = pneg %p38
    %p45 = scmp.eq.s32.totalorder %s8, 1
    %p46 = por %p44, %p45
    %p47 = scmp.ne.s32.totalorder %s39, %s42
    %p48 = scmp.eq.s32.totalorder %s8, 0
    %p49 = por %p47, %p48
    %p50 = scmp.ne.s32.totalorder %s39, %s42
    %p51 = scmp.eq.s32.totalorder %s13, 1
    %p52 = por %p50, %p51
    %p53 = scmp.ne.s32.totalorder %s42, %s43
    %p54 = scmp.eq.s32.totalorder %s13, 0
    %p55 = por %p53, %p54
    %p56 = scmp.ne.s32.totalorder %s42, %s43
    %p57 = scmp.eq.s32.totalorder %s14, 1
    %p58 = por %p56, %p57
    %p60 = scmp.ne.s32.totalorder %s43, %s59
    %p61 = scmp.eq.s32.totalorder %s14, 0
    %p62 = por %p60, %p61
    %s63 = ssub.s32 %s8, %s15
    %p64 = scmp.eq.s32.totalorder %s63, 0
    %s66 = sadd.s32 %s65, 1
    %s67 = scalar_select %p64, %s65, %s66
    %p70 = pneg %p64
    %p71 = scmp.eq.s32.totalorder %s8, 1
    %p72 = por %p70, %p71
    %p73 = scmp.ne.s32.totalorder %s65, %s68
    %p74 = scmp.eq.s32.totalorder %s8, 0
    %p75 = por %p73, %p74
    %p76 = scmp.ne.s32.totalorder %s65, %s68
    %p77 = scmp.eq.s32.totalorder %s13, 1
    %p78 = por %p76, %p77
    %p79 = scmp.ne.s32.totalorder %s68, %s69
    %p80 = scmp.eq.s32.totalorder %s13, 0
    %p81 = por %p79, %p80
    %p82 = scmp.ne.s32.totalorder %s68, %s69
    %p83 = scmp.eq.s32.totalorder %s14, 1
    %p84 = por %p82, %p83
    %p86 = scmp.ne.s32.totalorder %s69, %s85
    %p87 = scmp.eq.s32.totalorder %s14, 0
    %p88 = por %p86, %p87
    %p89 = scmp.le.s32.totalorder 1, %s8
    %p90 = scmp.lt.s32.totalorder %s8, 3
    %p91 = pnand %p89, %p90
    %p92 = pneg %p91
    // Predicated region
    $region9: #{self_attention_forward.1} parent=5 // pred_check
      _
    $region10: #{self_attention_forward.1} parent=5 // pred_check_branch
      %94 = sbr.rel (%p91) target = $region12
    $region11: #{self_attention_forward.1} parent=5 // pred_region
      %s95 = ssub.s32 %s8, 1
      // Predicated region
      $region13: #{self_attention_forward.1} parent=11 // pred_check
        %p96 = pneg %p29
      $region14: #{self_attention_forward.1} parent=11 // pred_check_branch
        %98 = sbr.rel (%p96) target = $region16
      $region15: #{self_attention_forward.1} parent=11 // pred_region
        _
      $region16: #{self_attention_forward.1} parent=11 // pred_fallthru
        _
    $region12: #{self_attention_forward.1} parent=5 // pred_fallthru
      _
    %p99 = scmp.lt.s32.totalorder %s8, 2
    // Predicated region
    $region17: #{self_attention_forward.1} parent=5 // pred_check
      %p100 = pneg %p99
    $region18: #{self_attention_forward.1} parent=5 // pred_check_branch
      %102 = sbr.rel (%p100) target = $region20
    $region19: #{self_attention_forward.1} parent=5 // pred_region
      // Predicated region
      $region21: #{self_attention_forward.1} parent=19 // pred_check
        %p103 = pneg %p49
      $region22: #{self_attention_forward.1} parent=19 // pred_check_branch
        %105 = sbr.rel (%p103) target = $region24
      $region23: #{self_attention_forward.1} parent=19 // pred_region
        %p106 = scmp.lt.s32.totalorder %s8, 1
        %s107 = scalar_select %p106, %s8, 1
        %s108 = smul.addr %s107, 2
        %s109 = smul.addr %s108, 4
        %s110 = scalar_lea.vmem %s1, %s109
      $region24: #{self_attention_forward.1} parent=19 // pred_fallthru
        _
    $region20: #{self_attention_forward.1} parent=5 // pred_fallthru
      _
    %p111 = scmp.le.s32.totalorder 1, %s8
    %p112 = scmp.lt.s32.totalorder %s8, 3
    %p113 = pnand %p111, %p112
    %p114 = pneg %p113
    // Predicated region
    $region25: #{self_attention_forward.1} parent=5 // pred_check
      _
    $region26: #{self_attention_forward.1} parent=5 // pred_check_branch
      %116 = sbr.rel (%p113) target = $region28
    $region27: #{self_attention_forward.1} parent=5 // pred_region
      %s117 = ssub.s32 %s8, 1
      %p118 = pneg %p29
      %p119 = pneg %p26
      %p120 = scmp.lt.s32.totalorder %s13, 1
      %s121 = scalar_select %p120, %s13, 1
      %s122 = smul.addr %s121, 2
      %s123 = smul.addr %s122, 4
      %s124 = scalar_lea.vmem %s1, %s123
      %p125 = pneg %p55
      %p126 = pneg %p52
      %p127 = pneg %p81
      %p128 = pneg %p78
      %p129 = scmp.lt.s32.totalorder %s13, 1
      %s130 = scalar_select %p129, %s13, 1
      %s131 = smul.addr %s130, 2
      %s132 = smul.addr %s131, 4
      %s133 = scalar_lea.vmem %s2, %s132
      %p134 = scmp.lt.s32.totalorder %s13, 1
      %s135 = scalar_select %p134, %s13, 1
      %s136 = smul.addr %s135, 2
      %s137 = smul.addr %s136, 4
      %s138 = scalar_lea.vmem %s1, %s137
      %p139 = scmp.lt.s32.totalorder %s13, 1
      %s140 = scalar_select %p139, %s13, 1
      %s141 = smul.addr %s140, 2
      %s142 = smul.addr %s141, 4
      %s143 = scalar_lea.vmem %s2, %s142
      %v144 = vld [vmem:[%s138] sm:$0xff]
      %v146 = vcombine.high %v144, %v144
      %148 = vmatprep.subr.mxu0 %v146
      %149 = vmatpush1.xpose.msra.mxu0 %v144
      %150 = vmatprep.subr.mxu0 0.0
      %151 = vmatpush1.xpose.msra.mxu0 0.0
      %152 = vmatprep.subr.mxu0 0.0
      %153 = vmatpush1.xpose.msra.mxu0 0.0
      %154 = vmatprep.subr.mxu0 0.0
      %155 = vmatpush1.xpose.msra.mxu0 0.0
      %156 = vmatprep.subr.mxu0 0.0
      %157 = vmatpush1.xpose.msra.mxu0 0.0
      %158 = vmatprep.subr.mxu0 0.0
      %159 = vmatpush1.xpose.msra.mxu0 0.0
      %160 = vmatprep.subr.mxu0 0.0
      %161 = vmatpush1.xpose.msra.mxu0 0.0
      %162 = vmatprep.subr.mxu0 0.0
      %163 = vmatpush1.xpose.msra.mxu0 0.0
      %164 = vmatprep.subr.mxu0 0.0
      %165 = vmatpush1.xpose.msra.mxu0 0.0
      %166 = vmatprep.subr.mxu0 0.0
      %167 = vmatpush1.xpose.msra.mxu0 0.0
      %168 = vmatprep.subr.mxu0 0.0
      %169 = vmatpush1.xpose.msra.mxu0 0.0
      %170 = vmatprep.subr.mxu0 0.0
      %171 = vmatpush1.xpose.msra.mxu0 0.0
      %172 = vmatprep.subr.mxu0 0.0
      %173 = vmatpush1.xpose.msra.mxu0 0.0
      %174 = vmatprep.subr.mxu0 0.0
      %175 = vmatpush1.xpose.msra.mxu0 0.0
      %176 = vmatprep.subr.mxu0 0.0
      %177 = vmatpush1.xpose.msra.mxu0 0.0
      %178 = vmatprep.subr.mxu0 0.0
      %179 = vmatpush1.xpose.msra.mxu0 0.0
      %180 = vmatprep.subr.mxu0 0.0
      %181 = vmatpush1.xpose.msra.mxu0 0.0
      %182 = vmatprep.subr.mxu0 0.0
      %183 = vmatpush1.xpose.msra.mxu0 0.0
      %184 = vmatprep.subr.mxu0 0.0
      %185 = vmatpush1.xpose.msra.mxu0 0.0
      %186 = vmatprep.subr.mxu0 0.0
      %187 = vmatpush1.xpose.msra.mxu0 0.0
      %188 = vmatprep.subr.mxu0 0.0
      %189 = vmatpush1.xpose.msra.mxu0 0.0
      %190 = vmatprep.subr.mxu0 0.0
      %191 = vmatpush1.xpose.msra.mxu0 0.0
      %192 = vmatprep.subr.mxu0 0.0
      %193 = vmatpush1.xpose.msra.mxu0 0.0
      %194 = vmatprep.subr.mxu0 0.0
      %195 = vmatpush1.xpose.msra.mxu0 0.0
      %196 = vmatprep.subr.mxu0 0.0
      %197 = vmatpush1.xpose.msra.mxu0 0.0
      %198 = vmatprep.subr.mxu0 0.0
      %199 = vmatpush1.xpose.msra.mxu0 0.0
      %200 = vmatprep.subr.mxu0 0.0
      %201 = vmatpush1.xpose.msra.mxu0 0.0
      %202 = vmatprep.subr.mxu0 0.0
      %203 = vmatpush1.xpose.msra.mxu0 0.0
      %204 = vmatprep.subr.mxu0 0.0
      %205 = vmatpush1.xpose.msra.mxu0 0.0
      %206 = vmatprep.subr.mxu0 0.0
      %207 = vmatpush1.xpose.msra.mxu0 0.0
      %208 = vmatprep.subr.mxu0 0.0
      %209 = vmatpush1.xpose.msra.mxu0 0.0
      %210 = vmatprep.subr.mxu0 0.0
      %211 = vmatpush1.xpose.msra.mxu0 0.0
      %212 = vmatprep.mubr.f32.mxu0 %v146
      %213 = vmatmul.mubr.f32.gmra.mrb[0].mxu0 %v144
      %v214 = vpop.f32.mrb[0].mxu0
      %v215 = vadd.f32 0.0, %v214
      %v216 = vpop.f32.mrb[0].mxu0
      %217 = vdwg.mxu0
      %v218 = vld [vmem:[%s0] sm:$0xf]
      %vm219 = vcmask 31744
      %v221 = vsel %vm219, %v215, 0
      %vm223 = vcmask 1043456
      %v225 = vsel %vm223, %v218, 0
      %227 = vmatprep.subr.mxu0 0.0
      %228 = vmatpush1.msra.mxu0 %v225
      %229 = vmatprep.subr.mxu0 0.0
      %230 = vmatpush1.msra.mxu0 0.0
      %231 = vmatprep.subr.mxu0 0.0
      %232 = vmatpush1.msra.mxu0 0.0
      %233 = vmatprep.subr.mxu0 0.0
      %234 = vmatpush1.msra.mxu0 0.0
      %235 = vmatprep.subr.mxu0 0.0
      %236 = vmatpush1.msra.mxu0 0.0
      %237 = vmatprep.subr.mxu0 0.0
      %238 = vmatpush1.msra.mxu0 0.0
      %239 = vmatprep.subr.mxu0 0.0
      %240 = vmatpush1.msra.mxu0 0.0
      %241 = vmatprep.subr.mxu0 0.0
      %242 = vmatpush1.msra.mxu0 0.0
      %243 = vmatprep.subr.mxu0 0.0
      %244 = vmatpush1.msra.mxu0 0.0
      %245 = vmatprep.subr.mxu0 0.0
      %246 = vmatpush1.msra.mxu0 0.0
      %247 = vmatprep.subr.mxu0 0.0
      %248 = vmatpush1.msra.mxu0 0.0
      %249 = vmatprep.subr.mxu0 0.0
      %250 = vmatpush1.msra.mxu0 0.0
      %251 = vmatprep.subr.mxu0 0.0
      %252 = vmatpush1.msra.mxu0 0.0
      %253 = vmatprep.subr.mxu0 0.0
      %254 = vmatpush1.msra.mxu0 0.0
      %255 = vmatprep.subr.mxu0 0.0
      %256 = vmatpush1.msra.mxu0 0.0
      %257 = vmatprep.subr.mxu0 0.0
      %258 = vmatpush1.msra.mxu0 0.0
      %259 = vmatprep.subr.mxu0 0.0
      %260 = vmatpush1.msra.mxu0 0.0
      %261 = vmatprep.subr.mxu0 0.0
      %262 = vmatpush1.msra.mxu0 0.0
      %263 = vmatprep.subr.mxu0 0.0
      %264 = vmatpush1.msra.mxu0 0.0
      %265 = vmatprep.subr.mxu0 0.0
      %266 = vmatpush1.msra.mxu0 0.0
      %267 = vmatprep.subr.mxu0 0.0
      %268 = vmatpush1.msra.mxu0 0.0
      %269 = vmatprep.subr.mxu0 0.0
      %270 = vmatpush1.msra.mxu0 0.0
      %271 = vmatprep.subr.mxu0 0.0
      %272 = vmatpush1.msra.mxu0 0.0
      %273 = vmatprep.subr.mxu0 0.0
      %274 = vmatpush1.msra.mxu0 0.0
      %275 = vmatprep.subr.mxu0 0.0
      %276 = vmatpush1.msra.mxu0 0.0
      %277 = vmatprep.subr.mxu0 0.0
      %278 = vmatpush1.msra.mxu0 0.0
      %279 = vmatprep.subr.mxu0 0.0
      %280 = vmatpush1.msra.mxu0 0.0
      %281 = vmatprep.subr.mxu0 0.0
      %282 = vmatpush1.msra.mxu0 0.0
      %283 = vmatprep.subr.mxu0 0.0
      %284 = vmatpush1.msra.mxu0 0.0
      %285 = vmatprep.subr.mxu0 0.0
      %286 = vmatpush1.msra.mxu0 0.0
      %287 = vmatprep.subr.mxu0 0.0
      %288 = vmatpush1.msra.mxu0 0.0
      %289 = vmatprep.subr.mxu0 0.0
      %290 = vmatpush1.msra.mxu0 0.0
      %291 = vmatprep.mubr.f32.mxu0 0.0
      %292 = vmatmul.mubr.f32.gmra.mrb[0].mxu0 %v221
      %v293 = vpop.f32.mrb[0].mxu0
      %v294 = vadd.f32 0.0, %v293
      %v295 = vpop.f32.mrb[0].mxu0
      %296 = vdwg.mxu0
      %v298 = vsel %vm219, %v294, 0
      %v300 = vsel %vm223, %v144, 0
      %v302 = vsel %vm223, %v146, 0
      %304 = vmatprep.subr.mxu0 %v302
      %305 = vmatpush1.msra.mxu0 %v300
      %306 = vmatprep.subr.mxu0 0.0
      %307 = vmatpush1.msra.mxu0 0.0
      %308 = vmatprep.subr.mxu0 0.0
      %309 = vmatpush1.msra.mxu0 0.0
      %310 = vmatprep.subr.mxu0 0.0
      %311 = vmatpush1.msra.mxu0 0.0
      %312 = vmatprep.subr.mxu0 0.0
      %313 = vmatpush1.msra.mxu0 0.0
      %314 = vmatprep.subr.mxu0 0.0
      %315 = vmatpush1.msra.mxu0 0.0
      %316 = vmatprep.subr.mxu0 0.0
      %317 = vmatpush1.msra.mxu0 0.0
      %318 = vmatprep.subr.mxu0 0.0
      %319 = vmatpush1.msra.mxu0 0.0
      %320 = vmatprep.subr.mxu0 0.0
      %321 = vmatpush1.msra.mxu0 0.0
      %322 = vmatprep.subr.mxu0 0.0
      %323 = vmatpush1.msra.mxu0 0.0
      %324 = vmatprep.subr.mxu0 0.0
      %325 = vmatpush1.msra.mxu0 0.0
      %326 = vmatprep.subr.mxu0 0.0
      %327 = vmatpush1.msra.mxu0 0.0
      %328 = vmatprep.subr.mxu0 0.0
      %329 = vmatpush1.msra.mxu0 0.0
      %330 = vmatprep.subr.mxu0 0.0
      %331 = vmatpush1.msra.mxu0 0.0
      %332 = vmatprep.subr.mxu0 0.0
      %333 = vmatpush1.msra.mxu0 0.0
      %334 = vmatprep.subr.mxu0 0.0
      %335 = vmatpush1.msra.mxu0 0.0
      %336 = vmatprep.subr.mxu0 0.0
      %337 = vmatpush1.msra.mxu0 0.0
      %338 = vmatprep.subr.mxu0 0.0
      %339 = vmatpush1.msra.mxu0 0.0
      %340 = vmatprep.subr.mxu0 0.0
      %341 = vmatpush1.msra.mxu0 0.0
      %342 = vmatprep.subr.mxu0 0.0
      %343 = vmatpush1.msra.mxu0 0.0
      %344 = vmatprep.subr.mxu0 0.0
      %345 = vmatpush1.msra.mxu0 0.0
      %346 = vmatprep.subr.mxu0 0.0
      %347 = vmatpush1.msra.mxu0 0.0
      %348 = vmatprep.subr.mxu0 0.0
      %349 = vmatpush1.msra.mxu0 0.0
      %350 = vmatprep.subr.mxu0 0.0
      %351 = vmatpush1.msra.mxu0 0.0
      %352 = vmatprep.subr.mxu0 0.0
      %353 = vmatpush1.msra.mxu0 0.0
      %354 = vmatprep.subr.mxu0 0.0
      %355 = vmatpush1.msra.mxu0 0.0
      %356 = vmatprep.subr.mxu0 0.0
      %357 = vmatpush1.msra.mxu0 0.0
      %358 = vmatprep.subr.mxu0 0.0
      %359 = vmatpush1.msra.mxu0 0.0
      %360 = vmatprep.subr.mxu0 0.0
      %361 = vmatpush1.msra.mxu0 0.0
      %362 = vmatprep.subr.mxu0 0.0
      %363 = vmatpush1.msra.mxu0 0.0
      %364 = vmatprep.subr.mxu0 0.0
      %365 = vmatpush1.msra.mxu0 0.0
      %366 = vmatprep.subr.mxu0 0.0
      %367 = vmatpush1.msra.mxu0 0.0
      %368 = vmatprep.mubr.f32.mxu0 0.0
      %369 = vmatmul.mubr.f32.gmra.mrb[0].mxu0 %v298
      %v370 = vpop.f32.mrb[0].mxu0
      %v371 = vadd.f32 %v144, %v370
      %v372 = vpop.f32.mrb[0].mxu0
      %v373 = vadd.f32 %v146, %v372
      %374 = vdwg.mxu0
      %v377 = vcombine.low %v371, %v373
      %379 = vst [vmem:[%s143] sm:$0xff] %v377
      %p380 = scmp.lt.s32.totalorder %s13, 1
      %s381 = scalar_select %p380, %s13, 1
      %s382 = smul.addr %s381, 2
      %s383 = smul.addr %s382, 4
      %s384 = scalar_lea.vmem %s2, %s383
      // Predicated region
      $region29: #{self_attention_forward.1} parent=27 // pred_check
        %p385 = pneg %p78
      $region30: #{self_attention_forward.1} parent=27 // pred_check_branch
        %387 = sbr.rel (%p385) target = $region32
      $region31: #{self_attention_forward.1} parent=27 // pred_region
        _
      $region32: #{self_attention_forward.1} parent=27 // pred_fallthru
        _
    $region28: #{self_attention_forward.1} parent=5 // pred_fallthru
      _
    %p388 = scmp.le.s32.totalorder 2, %s8
    // Predicated region
    $region33: #{self_attention_forward.1} parent=5 // pred_check
      %p389 = pneg %p388
    $region34: #{self_attention_forward.1} parent=5 // pred_check_branch
      %391 = sbr.rel (%p389) target = $region36
    $region35: #{self_attention_forward.1} parent=5 // pred_region
      %s392 = ssub.s32 %s8, 2
      // Predicated region
      $region37: #{self_attention_forward.1} parent=35 // pred_check
        %p393 = pneg %p84
      $region38: #{self_attention_forward.1} parent=35 // pred_check_branch
        %395 = sbr.rel (%p393) target = $region40
      $region39: #{self_attention_forward.1} parent=35 // pred_region
        %p396 = scmp.lt.s32.totalorder %s14, 1
        %s397 = scalar_select %p396, %s14, 1
        %s398 = smul.addr %s397, 2
        %s399 = smul.addr %s398, 4
        %s400 = scalar_lea.vmem %s2, %s399
      $region40: #{self_attention_forward.1} parent=35 // pred_fallthru
        _
    $region36: #{self_attention_forward.1} parent=5 // pred_fallthru
      _
  $region6: #{self_attention_forward.1} parent=0 // loop_footer
    %s12 = sadd.s32 1, %s8
  $region7: #{self_attention_forward.1} parent=0 // loop_footer_branch
    %7 = sbr.rel target = $region3
  $region8: #{self_attention_forward.1} parent=0 // loop_exit
    _

</llo_original>
